<compile_context>
chip_gen: v5e
topology: v5e:2x2
jax: 0.10.0
libtpu: 0.0.40
codegen_flags: <defaults>
</compile_context>

<pallas_src>
import math
import functools

import jax
import jax.numpy as jnp
import numpy as np
from jax import lax
from jax.experimental import pallas as pl
from jax.experimental.pallas import tpu as pltpu

# ---------------- problem sizes / constants ----------------
N = 16          # number of points (rows)
D_IN = 32       # in_features
D_OUT = 64      # out_features
LANE = 128      # TPU lane width -> pad output features to a multiple of this
CURVATURE = 1.0

MIN_NORM = 1e-15
MIN_NORM_SQ = MIN_NORM * MIN_NORM      # clamp on squared norms (== clamping norm at 1e-15)
EPS_F32 = 4e-3                         # PoincareBall.eps[torch.float32]
ARTANH_CLAMP = 1e-7                    # f32-safe clamp (torch clamps at 1e-15 in float64)


# ================= kernel-side helpers (traced inside the kernel) =================
def _artanh_pos(z):
    # arguments here are sqrt(c) * norm >= 0, so a one-sided clamp suffices.
    z = jnp.minimum(z, 1.0 - ARTANH_CLAMP)
    return 0.5 * (jnp.log1p(z) - jnp.log1p(-z))


def _proj_from_sq(x, x2, maxnorm):
    """Poincare-ball projection given x2 == sum(x*x, -1, keepdims=True).

    Returns (x_proj, norm_proj, inv_norm_proj, sq_proj) so downstream stages can
    reuse the norm instead of re-reducing.  Uses rsqrt (EUP) -- no f32 divides.
    """
    s = jnp.maximum(x2, MIN_NORM_SQ)
    inv_norm = lax.rsqrt(s)
    norm = s * inv_norm                      # == max(sqrt(x2), MIN_NORM)
    over = norm > maxnorm
    x_p = jnp.where(over, (maxnorm * inv_norm) * x, x)
    norm_p = jnp.where(over, maxnorm, norm)
    inv_norm_p = jnp.where(over, 1.0 / maxnorm, inv_norm)
    sq_p = jnp.where(over, maxnorm * maxnorm, x2)
    return x_p, norm_p, inv_norm_p, sq_p


# ---------------- Pallas kernel ----------------
def hnn_kernel(x_ref, wt_ref, hb_ref, o_ref, *, c):
    c = float(c)
    sqrt_c = math.sqrt(c)
    inv_sqrt_c = 1.0 / sqrt_c
    maxnorm = (1.0 - EPS_F32) / sqrt_c

    x = x_ref[...]            # (N, D_IN)
    wt = wt_ref[...]          # (D_IN, D_PAD)   pre-transposed, zero-padded weight
    hb = hb_ref[...]          # (1, D_PAD)      hyperbolic bias = proj(expmap0(bias))

    # ---- HypLinear: mobius_matvec(W, x, c) ----
    x2 = jnp.sum(x * x, axis=-1, keepdims=True)                    # reduction 1
    xs = jnp.maximum(x2, MIN_NORM_SQ)
    inv_x_norm = lax.rsqrt(xs)
    x_norm = xs * inv_x_norm                                       # == max(|x|, 1e-15)

    mx = jnp.dot(x, wt, preferred_element_type=jnp.float32)        # (N, D_PAD) on MXU
    mx2 = jnp.sum(mx * mx, axis=-1, keepdims=True)                 # reduction 2
    ms = jnp.maximum(mx2, MIN_NORM_SQ)
    inv_mx_norm = lax.rsqrt(ms)
    mx_norm = ms * inv_mx_norm

    tanh_arg = mx_norm * inv_x_norm * _artanh_pos(sqrt_c * x_norm)
    scale = jnp.tanh(tanh_arg) * inv_sqrt_c * inv_mx_norm
    scale = jnp.where(mx2 == 0.0, 0.0, scale)      # all-zero rows from RAW sumsq
    res = scale * mx
    res2 = (scale * scale) * mx2                   # sum(res*res) without a new reduce

    res, _, _, res2 = _proj_from_sq(res, res2, maxnorm)

    # ---- mobius_add with the precomputed hyperbolic bias ----
    y2 = jnp.sum(hb * hb, axis=-1, keepdims=True)                  # reduction 3 (1 row)
    xy = jnp.sum(res * hb, axis=-1, keepdims=True)                 # reduction 4
    cxy2 = 1.0 + 2.0 * c * xy
    num = (cxy2 + c * y2) * res + (1.0 - c * res2) * hb
    denom = cxy2 + (c * c) * res2 * y2
    inv_denom = 1.0 / jnp.maximum(denom, MIN_NORM)                 # (N,1) only
    h = num * inv_denom

    h2 = jnp.sum(h * h, axis=-1, keepdims=True)                    # reduction 5
    h, h_norm, inv_h_norm, _ = _proj_from_sq(h, h2, maxnorm)

    # ---- HypAct: relu in the tangent space at the origin ----
    log_scale = inv_sqrt_c * _artanh_pos(sqrt_c * h_norm) * inv_h_norm
    xt = jax.nn.relu(log_scale * h)                # proj_tan0 is identity on the ball

    u2 = jnp.sum(xt * xt, axis=-1, keepdims=True)                  # reduction 6
    us = jnp.maximum(u2, MIN_NORM_SQ)
    inv_u_norm = lax.rsqrt(us)
    u_norm = us * inv_u_norm
    e_scale = jnp.tanh(sqrt_c * u_norm) * inv_sqrt_c * inv_u_norm
    out = e_scale * xt
    out2 = (e_scale * e_scale) * u2                # sum(out*out) without a new reduce
    out, _, _, _ = _proj_from_sq(out, out2, maxnorm)

    o_ref[...] = out


# ================= reference-side hyperbolic helpers (pure JAX) =================
def _artanh(x):
    x = jnp.clip(x, -1.0 + ARTANH_CLAMP, 1.0 - ARTANH_CLAMP)
    return 0.5 * (jnp.log1p(x) - jnp.log1p(-x))


def _tanh(x):
    return jnp.tanh(jnp.clip(x, -15.0, 15.0))


def _row_norm(x):
    return jnp.maximum(jnp.sqrt(jnp.sum(x * x, axis=-1, keepdims=True)), MIN_NORM)


def _proj(x, c):
    norm = _row_norm(x)
    maxnorm = (1.0 - EPS_F32) / jnp.sqrt(c)
    return jnp.where(norm > maxnorm, x / norm * maxnorm, x)


def _expmap0(u, c):
    sqrt_c = jnp.sqrt(c)
    u_norm = _row_norm(u)
    return _tanh(sqrt_c * u_norm) * u / (sqrt_c * u_norm)


def _logmap0(p, c):
    sqrt_c = jnp.sqrt(c)
    p_norm = _row_norm(p)
    return (1.0 / sqrt_c) * _artanh(sqrt_c * p_norm) / p_norm * p


def _mobius_add(x, y, c):
    x2 = jnp.sum(x * x, axis=-1, keepdims=True)
    y2 = jnp.sum(y * y, axis=-1, keepdims=True)
    xy = jnp.sum(x * y, axis=-1, keepdims=True)
    num = (1.0 + 2.0 * c * xy + c * y2) * x + (1.0 - c * x2) * y
    denom = 1.0 + 2.0 * c * xy + c * c * x2 * y2
    return num / jnp.maximum(denom, MIN_NORM)


# ---------------- wrapper ----------------
def hnn_layer(x, weight, bias, c=CURVATURE):
    n, d_in = x.shape
    d_out = weight.shape[0]
    d_pad = ((d_out + LANE - 1) // LANE) * LANE   # lane-dense output width

    # Loop-invariant prep done once in the wrapper (pure JAX, outside the kernel):
    #   * transpose the weight so the kernel contracts over the shared last dim,
    #   * zero-pad the output feature dim to a multiple of 128 lanes (padded
    #     columns stay exactly zero through every hyperbolic op),
    #   * map the Euclidean bias onto the ball once: proj(expmap0(bias)).
    w_t = jnp.zeros((d_in, d_pad), jnp.float32).at[:, :d_out].set(
        weight.astype(jnp.float32).T)
    b_pad = jnp.zeros((1, d_pad), jnp.float32).at[:, :d_out].set(
        bias.astype(jnp.float32).reshape(1, d_out))
    hyp_bias = _proj(_expmap0(b_pad, jnp.float32(c)), jnp.float32(c))

    # Single grid step: at N=16 the whole working set is a few vregs; a row loop
    # would only add per-step pipeline overhead.  For large N, tile rows with a
    # (TILE_M, d_pad) out block and mark the row axis "parallel".
    out_pad = pl.pallas_call(
        functools.partial(hnn_kernel, c=float(c)),
        out_shape=jax.ShapeDtypeStruct((n, d_pad), jnp.float32),
        grid=(1,),
        in_specs=[
            pl.BlockSpec((n, d_in), lambda i: (0, 0)),
            pl.BlockSpec((d_in, d_pad), lambda i: (0, 0)),
            pl.BlockSpec((1, d_pad), lambda i: (0, 0)),
        ],
        out_specs=pl.BlockSpec((n, d_pad), lambda i: (0, 0)),
        compiler_params=pltpu.CompilerParams(
            dimension_semantics=("arbitrary",),
        ),
    )(x.astype(jnp.float32), w_t, hyp_bias)
    return out_pad[:, :d_out]


# ---------------- pure-JAX reference (original divide-based formulation) ----------------
def hnn_reference(x, weight, bias, c=CURVATURE):
    c = jnp.float32(c)
    sqrt_c = jnp.sqrt(c)
    x_norm = _row_norm(x)
    mx = x @ weight.T
    mx_norm = _row_norm(mx)
    res_c = _tanh(mx_norm / x_norm * _artanh(sqrt_c * x_norm)) * mx / (mx_norm * sqrt_c)
    res = jnp.where(jnp.all(mx == 0.0, axis=-1, keepdims=True), 0.0, res_c)
    res = _proj(res, c)
    hyp_bias = _proj(_expmap0(bias.reshape(1, -1), c), c)
    res = _proj(_mobius_add(res, hyp_bias, c), c)
    xt = jax.nn.relu(_logmap0(res, c))
    return _proj(_expmap0(xt, c), c)


if __name__ == "__main__":
    key = jax.random.PRNGKey(0)
    k_x, k_w, k_b = jax.random.split(key, 3)

    # Input: valid points on the Poincare ball — expmap0 of random tangent vectors.
    u = 0.5 * jax.random.normal(k_x, (N, D_IN), dtype=jnp.float32)
    x = _proj(_expmap0(u, jnp.float32(CURVATURE)), jnp.float32(CURVATURE))

    # HypLinear parameters: xavier_uniform_(gain=sqrt(2)) weight; small nonzero
    # bias so the mobius_add / bias path is actually exercised.
    limit = math.sqrt(2.0) * math.sqrt(6.0 / (D_IN + D_OUT))
    weight = jax.random.uniform(
        k_w, (D_OUT, D_IN), dtype=jnp.float32, minval=-limit, maxval=limit
    )
    bias = 0.05 * jax.random.normal(k_b, (D_OUT,), dtype=jnp.float32)

    out = hnn_layer(x, weight, bias)
    out = jax.block_until_ready(out)

    ref = hnn_reference(x, weight, bias)
    np.testing.assert_allclose(np.asarray(out), np.asarray(ref), rtol=1e-3, atol=1e-3)
    assert out.shape == (N, D_OUT) and out.dtype == jnp.float32

    print("KERNEL_OK")
</pallas_src>

<mosaic_0001>
module attributes {stable_mosaic.version = 11 : i64} {
  func.func @hnn_kernel(%arg0: i32, %arg1: memref<16x32xf32, #tpu.memory_space<vmem>>, %arg2: memref<32x128xf32, #tpu.memory_space<vmem>>, %arg3: memref<1x128xf32, #tpu.memory_space<vmem>>, %arg4: memref<16x128xf32, #tpu.memory_space<vmem>>) attributes {dimension_semantics = [#tpu.dimension_semantics<arbitrary>], iteration_bounds = array<i64: 1>, scalar_prefetch = 0 : i64, scratch_operands = 0 : i64, tpu.core_type = #tpu.core_type<tc>, window_params = [{pipeline_mode = #tpu.pipeline_mode<synchronous>, transform_indices = @transform_0, window_bounds = array<i64: 16, 32>}, {pipeline_mode = #tpu.pipeline_mode<synchronous>, transform_indices = @transform_1, window_bounds = array<i64: 32, 128>}, {pipeline_mode = #tpu.pipeline_mode<synchronous>, transform_indices = @transform_2, window_bounds = array<i64: 1, 128>}, {pipeline_mode = #tpu.pipeline_mode<synchronous>, transform_indices = @transform_3, window_bounds = array<i64: 16, 128>}]} {
    %c0 = arith.constant 0 : index
    %c0_0 = arith.constant 0 : index
    %0 = vector.load %arg1[%c0, %c0_0] : memref<16x32xf32, #tpu.memory_space<vmem>>, vector<16x32xf32>
    %c0_1 = arith.constant 0 : index
    %c0_2 = arith.constant 0 : index
    %1 = vector.load %arg2[%c0_1, %c0_2] : memref<32x128xf32, #tpu.memory_space<vmem>>, vector<32x128xf32>
    %c0_3 = arith.constant 0 : index
    %c0_4 = arith.constant 0 : index
    %2 = vector.load %arg3[%c0_3, %c0_4] : memref<1x128xf32, #tpu.memory_space<vmem>>, vector<1x128xf32>
    %3 = arith.mulf %0, %0 : vector<16x32xf32>
    %cst = arith.constant dense<0.000000e+00> : vector<16xf32>
    %4 = vector.multi_reduction <add>, %3, %cst [1] : vector<16x32xf32> to vector<16xf32>
    %5 = vector.shape_cast %4 : vector<16xf32> to vector<16x1xf32>
    %cst_5 = arith.constant 1.000000e-30 : f32
    %6 = vector.broadcast %cst_5 : f32 to vector<16x1xf32>
    %7 = arith.maximumf %5, %6 : vector<16x1xf32>
    %8 = math.rsqrt %7 : vector<16x1xf32>
    %9 = arith.mulf %7, %8 : vector<16x1xf32>
    %cst_6 = arith.constant dense<0.000000e+00> : vector<16x128xf32>
    %10 = tpu.matmul %0, %1, %cst_6 {dimension_numbers = #tpu.dot_dimension_numbers<[1], [0], [0], [1], [0, 0, 1, 1], [], []>} : vector<16x32xf32>, vector<32x128xf32>, vector<16x128xf32> -> vector<16x128xf32>
    %11 = arith.mulf %10, %10 : vector<16x128xf32>
    %cst_7 = arith.constant dense<0.000000e+00> : vector<16xf32>
    %12 = vector.multi_reduction <add>, %11, %cst_7 [1] : vector<16x128xf32> to vector<16xf32>
    %13 = vector.shape_cast %12 : vector<16xf32> to vector<16x1xf32>
    %cst_8 = arith.constant 1.000000e-30 : f32
    %14 = vector.broadcast %cst_8 : f32 to vector<16x1xf32>
    %15 = arith.maximumf %13, %14 : vector<16x1xf32>
    %16 = math.rsqrt %15 : vector<16x1xf32>
    %17 = arith.mulf %15, %16 : vector<16x1xf32>
    %18 = arith.mulf %17, %8 : vector<16x1xf32>
    %cst_9 = arith.constant 1.000000e+00 : f32
    %19 = vector.broadcast %cst_9 : f32 to vector<16x1xf32>
    %20 = arith.mulf %19, %9 : vector<16x1xf32>
    %cst_10 = arith.constant 0.99999988 : f32
    %21 = vector.broadcast %cst_10 : f32 to vector<16x1xf32>
    %22 = arith.minimumf %20, %21 : vector<16x1xf32>
    %23 = math.log1p %22 : vector<16x1xf32>
    %cst_11 = arith.constant 0.000000e+00 : f32
    %24 = vector.broadcast %cst_11 : f32 to vector<16x1xf32>
    %25 = arith.subf %24, %22 : vector<16x1xf32>
    %26 = math.log1p %25 : vector<16x1xf32>
    %27 = arith.subf %23, %26 : vector<16x1xf32>
    %cst_12 = arith.constant 5.000000e-01 : f32
    %28 = vector.broadcast %cst_12 : f32 to vector<16x1xf32>
    %29 = arith.mulf %28, %27 : vector<16x1xf32>
    %30 = arith.mulf %18, %29 : vector<16x1xf32>
    %31 = math.tanh %30 : vector<16x1xf32>
    %cst_13 = arith.constant 1.000000e+00 : f32
    %32 = vector.broadcast %cst_13 : f32 to vector<16x1xf32>
    %33 = arith.mulf %31, %32 : vector<16x1xf32>
    %34 = arith.mulf %33, %16 : vector<16x1xf32>
    %cst_14 = arith.constant 0.000000e+00 : f32
    %35 = vector.broadcast %cst_14 : f32 to vector<16x1xf32>
    %36 = arith.cmpf oeq, %13, %35 : vector<16x1xf32>
    %cst_15 = arith.constant 0.000000e+00 : f32
    %37 = vector.broadcast %cst_15 : f32 to vector<16x1xf32>
    %38 = arith.select %36, %37, %34 : vector<16x1xi1>, vector<16x1xf32>
    %39 = vector.broadcast %38 : vector<16x1xf32> to vector<16x128xf32>
    %40 = arith.mulf %39, %10 : vector<16x128xf32>
    %41 = arith.mulf %38, %38 : vector<16x1xf32>
    %42 = arith.mulf %41, %13 : vector<16x1xf32>
    %cst_16 = arith.constant 1.000000e-30 : f32
    %43 = vector.broadcast %cst_16 : f32 to vector<16x1xf32>
    %44 = arith.maximumf %42, %43 : vector<16x1xf32>
    %45 = math.rsqrt %44 : vector<16x1xf32>
    %46 = arith.mulf %44, %45 : vector<16x1xf32>
    %cst_17 = arith.constant 0.995999991 : f32
    %47 = vector.broadcast %cst_17 : f32 to vector<16x1xf32>
    %48 = arith.cmpf ogt, %46, %47 : vector<16x1xf32>
    %cst_18 = arith.constant 0.995999991 : f32
    %49 = vector.broadcast %cst_18 : f32 to vector<16x1xf32>
    %50 = arith.mulf %49, %45 : vector<16x1xf32>
    %51 = vector.broadcast %50 : vector<16x1xf32> to vector<16x128xf32>
    %52 = arith.mulf %51, %40 : vector<16x128xf32>
    %53 = vector.shape_cast %48 : vector<16x1xi1> to vector<16x1xi1>
    %54 = vector.broadcast %53 : vector<16x1xi1> to vector<16x128xi1>
    %55 = arith.select %54, %52, %40 : vector<16x128xi1>, vector<16x128xf32>
    %cst_19 = arith.constant 9.920160e-01 : f32
    %56 = vector.broadcast %cst_19 : f32 to vector<16x1xf32>
    %57 = arith.select %48, %56, %42 : vector<16x1xi1>, vector<16x1xf32>
    %58 = arith.mulf %2, %2 : vector<1x128xf32>
    %cst_20 = arith.constant dense<0.000000e+00> : vector<1xf32>
    %59 = vector.multi_reduction <add>, %58, %cst_20 [1] : vector<1x128xf32> to vector<1xf32>
    %60 = vector.shape_cast %59 : vector<1xf32> to vector<1x1xf32>
    %61 = vector.broadcast %2 : vector<1x128xf32> to vector<16x128xf32>
    %62 = arith.mulf %55, %61 : vector<16x128xf32>
    %cst_21 = arith.constant dense<0.000000e+00> : vector<16xf32>
    %63 = vector.multi_reduction <add>, %62, %cst_21 [1] : vector<16x128xf32> to vector<16xf32>
    %64 = vector.shape_cast %63 : vector<16xf32> to vector<16x1xf32>
    %cst_22 = arith.constant 2.000000e+00 : f32
    %65 = vector.broadcast %cst_22 : f32 to vector<16x1xf32>
    %66 = arith.mulf %65, %64 : vector<16x1xf32>
    %cst_23 = arith.constant 1.000000e+00 : f32
    %67 = vector.broadcast %cst_23 : f32 to vector<16x1xf32>
    %68 = arith.addf %67, %66 : vector<16x1xf32>
    %cst_24 = arith.constant 1.000000e+00 : f32
    %69 = vector.broadcast %cst_24 : f32 to vector<1x1xf32>
    %70 = arith.mulf %69, %60 : vector<1x1xf32>
    %71 = vector.broadcast %70 : vector<1x1xf32> to vector<16x1xf32>
    %72 = arith.addf %68, %71 : vector<16x1xf32>
    %73 = vector.broadcast %72 : vector<16x1xf32> to vector<16x128xf32>
    %74 = arith.mulf %73, %55 : vector<16x128xf32>
    %cst_25 = arith.constant 1.000000e+00 : f32
    %75 = vector.broadcast %cst_25 : f32 to vector<16x1xf32>
    %76 = arith.mulf %75, %57 : vector<16x1xf32>
    %cst_26 = arith.constant 1.000000e+00 : f32
    %77 = vector.broadcast %cst_26 : f32 to vector<16x1xf32>
    %78 = arith.subf %77, %76 : vector<16x1xf32>
    %79 = vector.broadcast %78 : vector<16x1xf32> to vector<16x128xf32>
    %80 = vector.broadcast %2 : vector<1x128xf32> to vector<16x128xf32>
    %81 = arith.mulf %79, %80 : vector<16x128xf32>
    %82 = arith.addf %74, %81 : vector<16x128xf32>
    %cst_27 = arith.constant 1.000000e+00 : f32
    %83 = vector.broadcast %cst_27 : f32 to vector<16x1xf32>
    %84 = arith.mulf %83, %57 : vector<16x1xf32>
    %85 = vector.broadcast %60 : vector<1x1xf32> to vector<16x1xf32>
    %86 = arith.mulf %84, %85 : vector<16x1xf32>
    %87 = arith.addf %68, %86 : vector<16x1xf32>
    %cst_28 = arith.constant 1.000000e-15 : f32
    %88 = vector.broadcast %cst_28 : f32 to vector<16x1xf32>
    %89 = arith.maximumf %87, %88 : vector<16x1xf32>
    %cst_29 = arith.constant 1.000000e+00 : f32
    %90 = vector.broadcast %cst_29 : f32 to vector<16x1xf32>
    %91 = arith.divf %90, %89 : vector<16x1xf32>
    %92 = vector.broadcast %91 : vector<16x1xf32> to vector<16x128xf32>
    %93 = arith.mulf %82, %92 : vector<16x128xf32>
    %94 = arith.mulf %93, %93 : vector<16x128xf32>
    %cst_30 = arith.constant dense<0.000000e+00> : vector<16xf32>
    %95 = vector.multi_reduction <add>, %94, %cst_30 [1] : vector<16x128xf32> to vector<16xf32>
    %96 = vector.shape_cast %95 : vector<16xf32> to vector<16x1xf32>
    %cst_31 = arith.constant 1.000000e-30 : f32
    %97 = vector.broadcast %cst_31 : f32 to vector<16x1xf32>
    %98 = arith.maximumf %96, %97 : vector<16x1xf32>
    %99 = math.rsqrt %98 : vector<16x1xf32>
    %100 = arith.mulf %98, %99 : vector<16x1xf32>
    %cst_32 = arith.constant 0.995999991 : f32
    %101 = vector.broadcast %cst_32 : f32 to vector<16x1xf32>
    %102 = arith.cmpf ogt, %100, %101 : vector<16x1xf32>
    %cst_33 = arith.constant 0.995999991 : f32
    %103 = vector.broadcast %cst_33 : f32 to vector<16x1xf32>
    %104 = arith.mulf %103, %99 : vector<16x1xf32>
    %105 = vector.broadcast %104 : vector<16x1xf32> to vector<16x128xf32>
    %106 = arith.mulf %105, %93 : vector<16x128xf32>
    %107 = vector.shape_cast %102 : vector<16x1xi1> to vector<16x1xi1>
    %108 = vector.broadcast %107 : vector<16x1xi1> to vector<16x128xi1>
    %109 = arith.select %108, %106, %93 : vector<16x128xi1>, vector<16x128xf32>
    %cst_34 = arith.constant 0.995999991 : f32
    %110 = vector.broadcast %cst_34 : f32 to vector<16x1xf32>
    %111 = arith.select %102, %110, %100 : vector<16x1xi1>, vector<16x1xf32>
    %cst_35 = arith.constant 1.00401604 : f32
    %112 = vector.broadcast %cst_35 : f32 to vector<16x1xf32>
    %113 = arith.select %102, %112, %99 : vector<16x1xi1>, vector<16x1xf32>
    %cst_36 = arith.constant 1.000000e+00 : f32
    %114 = vector.broadcast %cst_36 : f32 to vector<16x1xf32>
    %115 = arith.mulf %114, %111 : vector<16x1xf32>
    %cst_37 = arith.constant 0.99999988 : f32
    %116 = vector.broadcast %cst_37 : f32 to vector<16x1xf32>
    %117 = arith.minimumf %115, %116 : vector<16x1xf32>
    %118 = math.log1p %117 : vector<16x1xf32>
    %cst_38 = arith.constant 0.000000e+00 : f32
    %119 = vector.broadcast %cst_38 : f32 to vector<16x1xf32>
    %120 = arith.subf %119, %117 : vector<16x1xf32>
    %121 = math.log1p %120 : vector<16x1xf32>
    %122 = arith.subf %118, %121 : vector<16x1xf32>
    %cst_39 = arith.constant 5.000000e-01 : f32
    %123 = vector.broadcast %cst_39 : f32 to vector<16x1xf32>
    %124 = arith.mulf %123, %122 : vector<16x1xf32>
    %cst_40 = arith.constant 1.000000e+00 : f32
    %125 = vector.broadcast %cst_40 : f32 to vector<16x1xf32>
    %126 = arith.mulf %125, %124 : vector<16x1xf32>
    %127 = arith.mulf %126, %113 : vector<16x1xf32>
    %128 = vector.broadcast %127 : vector<16x1xf32> to vector<16x128xf32>
    %129 = arith.mulf %128, %109 : vector<16x128xf32>
    %cst_41 = arith.constant 0.000000e+00 : f32
    %130 = vector.broadcast %cst_41 : f32 to vector<16x128xf32>
    %131 = arith.maximumf %129, %130 : vector<16x128xf32>
    %132 = arith.mulf %131, %131 : vector<16x128xf32>
    %cst_42 = arith.constant dense<0.000000e+00> : vector<16xf32>
    %133 = vector.multi_reduction <add>, %132, %cst_42 [1] : vector<16x128xf32> to vector<16xf32>
    %134 = vector.shape_cast %133 : vector<16xf32> to vector<16x1xf32>
    %cst_43 = arith.constant 1.000000e-30 : f32
    %135 = vector.broadcast %cst_43 : f32 to vector<16x1xf32>
    %136 = arith.maximumf %134, %135 : vector<16x1xf32>
    %137 = math.rsqrt %136 : vector<16x1xf32>
    %138 = arith.mulf %136, %137 : vector<16x1xf32>
    %cst_44 = arith.constant 1.000000e+00 : f32
    %139 = vector.broadcast %cst_44 : f32 to vector<16x1xf32>
    %140 = arith.mulf %139, %138 : vector<16x1xf32>
    %141 = math.tanh %140 : vector<16x1xf32>
    %cst_45 = arith.constant 1.000000e+00 : f32
    %142 = vector.broadcast %cst_45 : f32 to vector<16x1xf32>
    %143 = arith.mulf %141, %142 : vector<16x1xf32>
    %144 = arith.mulf %143, %137 : vector<16x1xf32>
    %145 = vector.broadcast %144 : vector<16x1xf32> to vector<16x128xf32>
    %146 = arith.mulf %145, %131 : vector<16x128xf32>
    %147 = arith.mulf %144, %144 : vector<16x1xf32>
    %148 = arith.mulf %147, %134 : vector<16x1xf32>
    %cst_46 = arith.constant 1.000000e-30 : f32
    %149 = vector.broadcast %cst_46 : f32 to vector<16x1xf32>
    %150 = arith.maximumf %148, %149 : vector<16x1xf32>
    %151 = math.rsqrt %150 : vector<16x1xf32>
    %152 = arith.mulf %150, %151 : vector<16x1xf32>
    %cst_47 = arith.constant 0.995999991 : f32
    %153 = vector.broadcast %cst_47 : f32 to vector<16x1xf32>
    %154 = arith.cmpf ogt, %152, %153 : vector<16x1xf32>
    %cst_48 = arith.constant 0.995999991 : f32
    %155 = vector.broadcast %cst_48 : f32 to vector<16x1xf32>
    %156 = arith.mulf %155, %151 : vector<16x1xf32>
    %157 = vector.broadcast %156 : vector<16x1xf32> to vector<16x128xf32>
    %158 = arith.mulf %157, %146 : vector<16x128xf32>
    %159 = vector.shape_cast %154 : vector<16x1xi1> to vector<16x1xi1>
    %160 = vector.broadcast %159 : vector<16x1xi1> to vector<16x128xi1>
    %161 = arith.select %160, %158, %146 : vector<16x128xi1>, vector<16x128xf32>
    %c0_49 = arith.constant 0 : index
    %c0_50 = arith.constant 0 : index
    %162 = vector.load %arg4[%c0_49, %c0_50] : memref<16x128xf32, #tpu.memory_space<vmem>>, vector<16x128xf32>
    tpu.vector_store %arg4[%c0_49, %c0_50], %161 {strides = array<i32>} : memref<16x128xf32, #tpu.memory_space<vmem>>, vector<16x128xf32>,
    return
  }
  func.func @transform_0(%arg0: i32) -> (i32, i32) {
    %c0_i32 = arith.constant 0 : i32
    %c0_i32_0 = arith.constant 0 : i32
    %c0_i32_1 = arith.constant 0 : i32
    return %c0_i32, %c0_i32_0 : i32, i32
  }
  func.func @transform_1(%arg0: i32) -> (i32, i32) {
    %c0_i32 = arith.constant 0 : i32
    %c0_i32_0 = arith.constant 0 : i32
    %c0_i32_1 = arith.constant 0 : i32
    return %c0_i32, %c0_i32_0 : i32, i32
  }
  func.func @transform_2(%arg0: i32) -> (i32, i32) {
    %c0_i32 = arith.constant 0 : i32
    %c0_i32_0 = arith.constant 0 : i32
    %c0_i32_1 = arith.constant 0 : i32
    return %c0_i32, %c0_i32_0 : i32, i32
  }
  func.func @transform_3(%arg0: i32) -> (i32, i32) {
    %c0_i32 = arith.constant 0 : i32
    %c0_i32_0 = arith.constant 0 : i32
    %c0_i32_1 = arith.constant 0 : i32
    return %c0_i32, %c0_i32_0 : i32, i32
  }
}

</mosaic_0001>

<llo_original>
// kernel: tpu_custom_call.1
$region0: #{tpu_custom_call.1}
  #allocation0 [shape = 'u32[]', space=smem, size = 0x4, offset = 0x4, fixed_abs, tag = 'smem constant byte address 0x4 - core index']
  #allocation1 [shape = 'u32[72,128]{1,0:T(1,128)}', space=vmem, size = 0x9000, scoped, tag = 'internal scratch']
  %s0 = inlined_call_operand.hbm [shape: f32[16,32], index: 0, kind: input, shape index: {}]
  %s1 = inlined_call_operand.hbm [shape: f32[32,128], index: 1, kind: input, shape index: {}]
  %s2 = inlined_call_operand.vmem [shape: f32[1,128], index: 2, kind: input, shape index: {}]
  %s3 = inlined_call_operand.hbm [shape: f32[16,128], index: 3, kind: output, shape index: {}]
  %s4 = sld [smem:[#allocation0]]
  $region30: #{tpu_custom_call.1} parent=0
    _
  %s6 = ssub.s32 1, %s4
  %s7 = scalar_select 0, %s6, %s4
  $region1: #{tpu_custom_call.1} parent=0
    #allocation2 [shape = 'u8[8192]{0}', space=vmem, size = 0x2000, scoped, tag = 'input window, operand 0, single buffered']
    #allocation3 [shape = 's32[1]{0}', space=sflag, size = 0x4, scoped, tag = 'scoped memory for tpu_custom_call.1']
    #allocation4 [shape = 's32[1]{0}', space=sflag, size = 0x4, scoped, tag = 'scoped memory for tpu_custom_call.1']
    #allocation5 [shape = 'u8[16384]{0}', space=vmem, size = 0x4000, scoped, tag = 'input window, operand 1, single buffered']
    #allocation6 [shape = 's32[1]{0}', space=sflag, size = 0x4, scoped, tag = 'scoped memory for tpu_custom_call.1']
    #allocation7 [shape = 'u8[8192]{0}', space=vmem, size = 0x2000, scoped, tag = 'output window, operand 0, single buffered']
    %8 = vsyncpa [#allocation3], 0
    %9 = vsyncpa [#allocation6], 0
    %10 = vsyncpa [#allocation4], 0
    // Predicated region
    $region2: #{tpu_custom_call.1} parent=1 // pred_check
      _
    $region3: #{tpu_custom_call.1} parent=1 // pred_check_branch
      %12 = sbr.rel (0) target = $region5
    $region4: #{tpu_custom_call.1} parent=1 // pred_region
      %14 = vsyncadd [#allocation3], 0
      %s15 = sshll.u32 %s0, 4
      %s16 = int_to_ptr.hbm [resolvable:$true] %s15
      %s17 = sshll.u32 [#allocation2], 4
      %s18 = int_to_ptr.vmem [resolvable:$true] %s17
      %23 = dma.hbm_to_vmem [thread:$0]  %s16, 256, %s18, [#allocation3], 128, 128, 8
    $region5: #{tpu_custom_call.1} parent=1 // pred_fallthru
      _
    // Predicated region
    $region6: #{tpu_custom_call.1} parent=1 // pred_check
      _
    $region7: #{tpu_custom_call.1} parent=1 // pred_check_branch
      %25 = sbr.rel (0) target = $region9
    $region8: #{tpu_custom_call.1} parent=1 // pred_region
      %27 = vsyncadd [#allocation6], 0
      %s28 = sshll.u32 %s1, 4
      %s29 = int_to_ptr.hbm [resolvable:$true] %s28
      %s30 = sshll.u32 [#allocation5], 4
      %s31 = int_to_ptr.vmem [resolvable:$true] %s30
      %36 = dma.hbm_to_vmem [thread:$0]  %s29, 512, %s31, [#allocation6], 128, 128, 8
    $region9: #{tpu_custom_call.1} parent=1 // pred_fallthru
      _
    // Predicated region
    $region10: #{tpu_custom_call.1} parent=1 // pred_check
      _
    $region11: #{tpu_custom_call.1} parent=1 // pred_check_branch
      %38 = sbr.rel (0) target = $region13
    $region12: #{tpu_custom_call.1} parent=1 // pred_region
      _
    $region13: #{tpu_custom_call.1} parent=1 // pred_fallthru
      _
    // Predicated region
    $region14: #{tpu_custom_call.1} parent=1 // pred_check
      _
    $region15: #{tpu_custom_call.1} parent=1 // pred_check_branch
      %40 = sbr.rel (0) target = $region17
    $region16: #{tpu_custom_call.1} parent=1 // pred_region
      %42 = dma.done [#allocation3], 256
    $region17: #{tpu_custom_call.1} parent=1 // pred_fallthru
      _
    // Predicated region
    $region18: #{tpu_custom_call.1} parent=1 // pred_check
      _
    $region19: #{tpu_custom_call.1} parent=1 // pred_check_branch
      %44 = sbr.rel (0) target = $region21
    $region20: #{tpu_custom_call.1} parent=1 // pred_region
      %46 = dma.done [#allocation6], 512
    $region21: #{tpu_custom_call.1} parent=1 // pred_fallthru
      _
    %v47 = vld [vmem:[#allocation2] sm:$0xff]
    %v48 = vld [vmem:[#allocation2 + $0x8] sm:$0xff]
    %v49 = vld [vmem:[#allocation5] sm:$0xff]
    %v50 = vld [vmem:[#allocation5 + $0x8] sm:$0xff]
    %v51 = vld [vmem:[#allocation5 + $0x10] sm:$0xff]
    %v52 = vld [vmem:[#allocation5 + $0x18] sm:$0xff]
    %v53 = vld [vmem:[%s2] sm:$0x1]
    %v54 = vmul.f32 %v47, %v47
    %v55 = vmul.f32 %v48, %v48
    %vm56 = vcmask 261120
    %v57 = vsel %vm56, %v54, 0.0
    %58 = vadd.xlane.f32.xlu0 %v57
    %v59 = vpop.xlane.xlu0 %58
    %v60 = vsel %vm56, %v55, 0.0
    %61 = vadd.xlane.f32.xlu0 %v60
    %v62 = vpop.xlane.xlu0 %61
    %v63 = vmax.f32 %v59, 1e-30
    %v64 = vmax.f32 %v62, 1e-30
    %v65 = vrsqrt.pop %v63
    %v66 = vmul.f32 %v65, %v63
    %v67 = vmul.f32 %v66, %v65
    %v68 = vmul.f32 0.5, %v67
    %v69 = vsub.f32 1.5, %v68
    %v70 = vmul.f32 %v65, %v69
    %vm71 = vweird.f32 %v63
    %vm72 = vweird.f32 %v65
    %vm73 = vmor %vm71, %vm72
    %v74 = vsel %vm73, %v65, %v70
    %v75 = vrsqrt.pop %v64
    %v76 = vmul.f32 %v75, %v64
    %v77 = vmul.f32 %v76, %v75
    %v78 = vmul.f32 0.5, %v77
    %v79 = vsub.f32 1.5, %v78
    %v80 = vmul.f32 %v75, %v79
    %vm81 = vweird.f32 %v64
    %vm82 = vweird.f32 %v75
    %vm83 = vmor %vm81, %vm82
    %v84 = vsel %vm83, %v75, %v80
    %v85 = vmul.f32 %v63, %v74
    %v86 = vmul.f32 %v64, %v84
    %v88 = vsel %vm56, %v47, 0
    %v91 = vsel %vm56, %v48, 0
    %93 = vmatpush.msra.mxu0 0.0
    %94 = vmatpush.msra.mxu0 0.0
    %95 = vmatpush.msra.mxu0 0.0
    %96 = vmatpush.msra.mxu0 0.0
    %97 = vmatpush.msra.mxu0 0.0
    %98 = vmatpush.msra.mxu0 0.0
    %99 = vmatpush.msra.mxu0 0.0
    %100 = vmatpush.msra.mxu0 0.0
    %101 = vmatpush.msra.mxu0 0.0
    %102 = vmatpush.msra.mxu0 0.0
    %103 = vmatpush.msra.mxu0 0.0
    %104 = vmatpush.msra.mxu0 0.0
    %105 = vmatpush.msra.mxu0 %v52
    %106 = vmatpush.msra.mxu0 %v51
    %107 = vmatpush.msra.mxu0 %v50
    %108 = vmatpush.msra.mxu0 %v49
    %109 = vmatmul.f32.gmra.mxu0 %v88
    %v110 = vpop.f32.mrf.mxu0
    %v111 = vadd.f32 0.0, %v110
    %112 = vmatmul.f32.gmra.mxu0 %v91
    %v113 = vpop.f32.mrf.mxu0
    %v114 = vadd.f32 0.0, %v113
    %115 = vdwg.mxu0
    %v116 = vmul.f32 %v111, %v111
    %v117 = vmul.f32 %v114, %v114
    %118 = vadd.xlane.f32.xlu0 %v116
    %v119 = vpop.xlane.xlu0 %118
    %120 = vadd.xlane.f32.xlu0 %v117
    %v121 = vpop.xlane.xlu0 %120
    %v122 = vmax.f32 %v119, 1e-30
    %v123 = vmax.f32 %v121, 1e-30
    %v124 = vrsqrt.pop %v122
    %v125 = vmul.f32 %v124, %v122
    %v126 = vmul.f32 %v125, %v124
    %v127 = vmul.f32 0.5, %v126
    %v128 = vsub.f32 1.5, %v127
    %v129 = vmul.f32 %v124, %v128
    %vm130 = vweird.f32 %v122
    %vm131 = vweird.f32 %v124
    %vm132 = vmor %vm130, %vm131
    %v133 = vsel %vm132, %v124, %v129
    %v134 = vrsqrt.pop %v123
    %v135 = vmul.f32 %v134, %v123
    %v136 = vmul.f32 %v135, %v134
    %v137 = vmul.f32 0.5, %v136
    %v138 = vsub.f32 1.5, %v137
    %v139 = vmul.f32 %v134, %v138
    %vm140 = vweird.f32 %v123
    %vm141 = vweird.f32 %v134
    %vm142 = vmor %vm140, %vm141
    %v143 = vsel %vm142, %v134, %v139
    %v144 = vmul.f32 %v122, %v133
    %v145 = vmul.f32 %v123, %v143
    %v146 = vmul.f32 %v144, %v74
    %v147 = vmul.f32 %v145, %v84
    %v148 = vmin.f32 %v85, 0.9999999
    %v149 = vmin.f32 %v86, 0.9999999
    %v150 = vadd.f32 %v148, 1.0
    %v151 = vlog2.pop %v150
    %v152 = vmul.f32 %v151, 0.6931472
    %v153 = vmul.f32 -0.5, %v148
    %v154 = vadd.f32 %v153, 1.0
    %v155 = vmul.f32 %v154, %v148
    %v156 = vand.u32 2147483647, %v148
    %vm157 = vcmp.lt.f32.partialorder %v156, 0.0004427343
    %v158 = vsel %vm157, %v155, %v152
    %v159 = vadd.f32 %v149, 1.0
    %v160 = vlog2.pop %v159
    %v161 = vmul.f32 %v160, 0.6931472
    %v162 = vmul.f32 -0.5, %v149
    %v163 = vadd.f32 %v162, 1.0
    %v164 = vmul.f32 %v163, %v149
    %v165 = vand.u32 2147483647, %v149
    %vm166 = vcmp.lt.f32.partialorder %v165, 0.0004427343
    %v167 = vsel %vm166, %v164, %v161
    %v168 = vsub.f32 0.0, %v148
    %v169 = vsub.f32 0.0, %v149
    %v170 = vadd.f32 %v168, 1.0
    %v171 = vlog2.pop %v170
    %v172 = vmul.f32 %v171, 0.6931472
    %v173 = vmul.f32 -0.5, %v168
    %v174 = vadd.f32 %v173, 1.0
    %v175 = vmul.f32 %v174, %v168
    %v176 = vand.u32 2147483647, %v168
    %vm177 = vcmp.lt.f32.partialorder %v176, 0.0004427343
    %v178 = vsel %vm177, %v175, %v172
    %v179 = vadd.f32 %v169, 1.0
    %v180 = vlog2.pop %v179
    %v181 = vmul.f32 %v180, 0.6931472
    %v182 = vmul.f32 -0.5, %v169
    %v183 = vadd.f32 %v182, 1.0
    %v184 = vmul.f32 %v183, %v169
    %v185 = vand.u32 2147483647, %v169
    %vm186 = vcmp.lt.f32.partialorder %v185, 0.0004427343
    %v187 = vsel %vm186, %v184, %v181
    %v188 = vsub.f32 %v158, %v178
    %v189 = vsub.f32 %v167, %v187
    %v190 = vmul.f32 %v188, 0.5
    %v191 = vmul.f32 %v189, 0.5
    %v192 = vmul.f32 %v146, %v190
    %v193 = vmul.f32 %v147, %v191
    %v194 = vtanh.pop %v192
    %v195 = vtanh.pop %v193
    %v196 = vmul.f32 %v194, %v133
    %v197 = vmul.f32 %v195, %v143
    %vm198 = vcmp.eq.f32.partialorder %v119, 0.0
    %vm199 = vcmp.eq.f32.partialorder %v121, 0.0
    %v200 = vsel %vm198, 0.0, %v196
    %v201 = vsel %vm199, 0.0, %v197
    %v202 = vmul.f32 %v200, %v111
    %v203 = vmul.f32 %v201, %v114
    %v204 = vmul.f32 %v200, %v200
    %v205 = vmul.f32 %v201, %v201
    %v206 = vmul.f32 %v204, %v119
    %v207 = vmul.f32 %v205, %v121
    %v208 = vmax.f32 %v206, 1e-30
    %v209 = vmax.f32 %v207, 1e-30
    %v210 = vrsqrt.pop %v208
    %v211 = vmul.f32 %v210, %v208
    %v212 = vmul.f32 %v211, %v210
    %v213 = vmul.f32 0.5, %v212
    %v214 = vsub.f32 1.5, %v213
    %v215 = vmul.f32 %v210, %v214
    %vm216 = vweird.f32 %v208
    %vm217 = vweird.f32 %v210
    %vm218 = vmor %vm216, %vm217
    %v219 = vsel %vm218, %v210, %v215
    %v220 = vrsqrt.pop %v209
    %v221 = vmul.f32 %v220, %v209
    %v222 = vmul.f32 %v221, %v220
    %v223 = vmul.f32 0.5, %v222
    %v224 = vsub.f32 1.5, %v223
    %v225 = vmul.f32 %v220, %v224
    %vm226 = vweird.f32 %v209
    %vm227 = vweird.f32 %v220
    %vm228 = vmor %vm226, %vm227
    %v229 = vsel %vm228, %v220, %v225
    %v230 = vmul.f32 %v208, %v219
    %v231 = vmul.f32 %v209, %v229
    %vm232 = vcmp.gt.f32.partialorder %v230, 0.996
    %vm233 = vcmp.gt.f32.partialorder %v231, 0.996
    %v234 = vmul.f32 %v219, 0.996
    %v235 = vmul.f32 %v229, 0.996
    %v236 = vmul.f32 %v234, %v202
    %v237 = vmul.f32 %v235, %v203
    %v238 = vsel %vm232, 1, 0
    %v239 = vsel %vm233, 1, 0
    %vm240 = vcmp.eq.s32.totalorder %v238, 1
    %vm241 = vcmp.eq.s32.totalorder %v239, 1
    %v242 = vsel %vm240, %v236, %v202
    %v243 = vsel %vm241, %v237, %v203
    %v244 = vsel %vm232, 0.992016, %v206
    %v245 = vsel %vm233, 0.992016, %v207
    %v246 = vmul.f32 %v53, %v53
    %vm247 = vcmask 1040384
    %v248 = vsel %vm247, %v246, 0.0
    %249 = vadd.xlane.f32.xlu0 %v248
    %v250 = vpop.xlane.xlu0 %249
    %v252 = vperm.slane %v53, 0
    %v254 = vmul.f32 %v242, %v252
    %v255 = vmul.f32 %v243, %v252
    %256 = vadd.xlane.f32.xlu0 %v254
    %v257 = vpop.xlane.xlu0 %256
    %258 = vadd.xlane.f32.xlu0 %v255
    %v259 = vpop.xlane.xlu0 %258
    %v260 = vmul.f32 %v257, 2.0
    %v261 = vmul.f32 %v259, 2.0
    %v262 = vadd.f32 %v260, 1.0
    %v263 = vadd.f32 %v261, 1.0
    %v264 = vperm.slane %v250, 0
    %v265 = vadd.f32 %v262, %v264
    %v266 = vadd.f32 %v263, %v264
    %v267 = vmul.f32 %v265, %v242
    %v268 = vmul.f32 %v266, %v243
    %v269 = vsub.f32 1.0, %v244
    %v270 = vsub.f32 1.0, %v245
    %v271 = vmul.f32 %v269, %v252
    %v272 = vmul.f32 %v270, %v252
    %v273 = vadd.f32 %v267, %v271
    %v274 = vadd.f32 %v268, %v272
    %v275 = vmul.f32 %v244, %v264
    %v276 = vmul.f32 %v245, %v264
    %v277 = vadd.f32 %v262, %v275
    %v278 = vadd.f32 %v263, %v276
    %v279 = vmax.f32 %v277, 1e-15
    %v280 = vmax.f32 %v278, 1e-15
    %v281 = vrcp.pop %v279
    %v282 = vmul.f32 %v279, %v281
    %v283 = vsub.f32 1.0, %v282
    %v284 = vmul.f32 %v281, %v283
    %v285 = vadd.f32 %v281, %v284
    %vm286 = vweird.f32 %v279
    %vm287 = vweird.f32 %v281
    %vm288 = vmor %vm286, %vm287
    %v289 = vsel %vm288, %v281, %v285
    %v290 = vand.u32 2147483647, %v279
    %vm291 = vcmp.eq.f32.partialorder %v290, 8.507059e+37
    %v292 = vand.u32 %v279, 2147483648
    %v293 = vor.u32 1.1754944e-38, %v292
    %v294 = vsel %vm291, %v293, %v289
    %v295 = vmul.f32 1.0, %v294
    %v296 = vrcp.pop %v280
    %v297 = vmul.f32 %v280, %v296
    %v298 = vsub.f32 1.0, %v297
    %v299 = vmul.f32 %v296, %v298
    %v300 = vadd.f32 %v296, %v299
    %vm301 = vweird.f32 %v280
    %vm302 = vweird.f32 %v296
    %vm303 = vmor %vm301, %vm302
    %v304 = vsel %vm303, %v296, %v300
    %v305 = vand.u32 2147483647, %v280
    %vm306 = vcmp.eq.f32.partialorder %v305, 8.507059e+37
    %v307 = vand.u32 %v280, 2147483648
    %v308 = vor.u32 1.1754944e-38, %v307
    %v309 = vsel %vm306, %v308, %v304
    %v310 = vmul.f32 1.0, %v309
    %v311 = vmul.f32 %v273, %v295
    %v312 = vmul.f32 %v274, %v310
    %v313 = vmul.f32 %v311, %v311
    %v314 = vmul.f32 %v312, %v312
    %315 = vadd.xlane.f32.xlu0 %v313
    %v316 = vpop.xlane.xlu0 %315
    %317 = vadd.xlane.f32.xlu0 %v314
    %v318 = vpop.xlane.xlu0 %317
    %v319 = vmax.f32 %v316, 1e-30
    %v320 = vmax.f32 %v318, 1e-30
    %v321 = vrsqrt.pop %v319
    %v322 = vmul.f32 %v321, %v319
    %v323 = vmul.f32 %v322, %v321
    %v324 = vmul.f32 0.5, %v323
    %v325 = vsub.f32 1.5, %v324
    %v326 = vmul.f32 %v321, %v325
    %vm327 = vweird.f32 %v319
    %vm328 = vweird.f32 %v321
    %vm329 = vmor %vm327, %vm328
    %v330 = vsel %vm329, %v321, %v326
    %v331 = vrsqrt.pop %v320
    %v332 = vmul.f32 %v331, %v320
    %v333 = vmul.f32 %v332, %v331
    %v334 = vmul.f32 0.5, %v333
    %v335 = vsub.f32 1.5, %v334
    %v336 = vmul.f32 %v331, %v335
    %vm337 = vweird.f32 %v320
    %vm338 = vweird.f32 %v331
    %vm339 = vmor %vm337, %vm338
    %v340 = vsel %vm339, %v331, %v336
    %v341 = vmul.f32 %v319, %v330
    %v342 = vmul.f32 %v320, %v340
    %vm343 = vcmp.gt.f32.partialorder %v341, 0.996
    %vm344 = vcmp.gt.f32.partialorder %v342, 0.996
    %v345 = vmul.f32 %v330, 0.996
    %v346 = vmul.f32 %v340, 0.996
    %v347 = vmul.f32 %v345, %v311
    %v348 = vmul.f32 %v346, %v312
    %v349 = vsel %vm343, 1, 0
    %v350 = vsel %vm344, 1, 0
    %vm351 = vcmp.eq.s32.totalorder %v349, 1
    %vm352 = vcmp.eq.s32.totalorder %v350, 1
    %v353 = vsel %vm351, %v347, %v311
    %v354 = vsel %vm352, %v348, %v312
    %v355 = vsel %vm343, 0.996, %v341
    %v356 = vsel %vm344, 0.996, %v342
    %v357 = vsel %vm343, 1.004016, %v330
    %v358 = vsel %vm344, 1.004016, %v340
    %v359 = vmin.f32 %v355, 0.9999999
    %v360 = vmin.f32 %v356, 0.9999999
    %v361 = vadd.f32 %v359, 1.0
    %v362 = vlog2.pop %v361
    %v363 = vmul.f32 %v362, 0.6931472
    %v364 = vmul.f32 -0.5, %v359
    %v365 = vadd.f32 %v364, 1.0
    %v366 = vmul.f32 %v365, %v359
    %v367 = vand.u32 2147483647, %v359
    %vm368 = vcmp.lt.f32.partialorder %v367, 0.0004427343
    %v369 = vsel %vm368, %v366, %v363
    %v370 = vadd.f32 %v360, 1.0
    %v371 = vlog2.pop %v370
    %v372 = vmul.f32 %v371, 0.6931472
    %v373 = vmul.f32 -0.5, %v360
    %v374 = vadd.f32 %v373, 1.0
    %v375 = vmul.f32 %v374, %v360
    %v376 = vand.u32 2147483647, %v360
    %vm377 = vcmp.lt.f32.partialorder %v376, 0.0004427343
    %v378 = vsel %vm377, %v375, %v372
    %v379 = vsub.f32 0.0, %v359
    %v380 = vsub.f32 0.0, %v360
    %v381 = vadd.f32 %v379, 1.0
    %v382 = vlog2.pop %v381
    %v383 = vmul.f32 %v382, 0.6931472
    %v384 = vmul.f32 -0.5, %v379
    %v385 = vadd.f32 %v384, 1.0
    %v386 = vmul.f32 %v385, %v379
    %v387 = vand.u32 2147483647, %v379
    %vm388 = vcmp.lt.f32.partialorder %v387, 0.0004427343
    %v389 = vsel %vm388, %v386, %v383
    %v390 = vadd.f32 %v380, 1.0
    %v391 = vlog2.pop %v390
    %v392 = vmul.f32 %v391, 0.6931472
    %v393 = vmul.f32 -0.5, %v380
    %v394 = vadd.f32 %v393, 1.0
    %v395 = vmul.f32 %v394, %v380
    %v396 = vand.u32 2147483647, %v380
    %vm397 = vcmp.lt.f32.partialorder %v396, 0.0004427343
    %v398 = vsel %vm397, %v395, %v392
    %v399 = vsub.f32 %v369, %v389
    %v400 = vsub.f32 %v378, %v398
    %v401 = vmul.f32 %v399, 0.5
    %v402 = vmul.f32 %v400, 0.5
    %v403 = vmul.f32 %v401, %v357
    %v404 = vmul.f32 %v402, %v358
    %v405 = vmul.f32 %v403, %v353
    %v406 = vmul.f32 %v404, %v354
    %v407 = vmax.f32 %v405, 0.0
    %v408 = vmax.f32 %v406, 0.0
    %v409 = vmul.f32 %v407, %v407
    %v410 = vmul.f32 %v408, %v408
    %411 = vadd.xlane.f32.xlu0 %v409
    %v412 = vpop.xlane.xlu0 %411
    %413 = vadd.xlane.f32.xlu0 %v410
    %v414 = vpop.xlane.xlu0 %413
    %v415 = vmax.f32 %v412, 1e-30
    %v416 = vmax.f32 %v414, 1e-30
    %v417 = vrsqrt.pop %v415
    %v418 = vmul.f32 %v417, %v415
    %v419 = vmul.f32 %v418, %v417
    %v420 = vmul.f32 0.5, %v419
    %v421 = vsub.f32 1.5, %v420
    %v422 = vmul.f32 %v417, %v421
    %vm423 = vweird.f32 %v415
    %vm424 = vweird.f32 %v417
    %vm425 = vmor %vm423, %vm424
    %v426 = vsel %vm425, %v417, %v422
    %v427 = vrsqrt.pop %v416
    %v428 = vmul.f32 %v427, %v416
    %v429 = vmul.f32 %v428, %v427
    %v430 = vmul.f32 0.5, %v429
    %v431 = vsub.f32 1.5, %v430
    %v432 = vmul.f32 %v427, %v431
    %vm433 = vweird.f32 %v416
    %vm434 = vweird.f32 %v427
    %vm435 = vmor %vm433, %vm434
    %v436 = vsel %vm435, %v427, %v432
    %v437 = vmul.f32 %v415, %v426
    %v438 = vmul.f32 %v416, %v436
    %v439 = vtanh.pop %v437
    %v440 = vtanh.pop %v438
    %v441 = vmul.f32 %v439, %v426
    %v442 = vmul.f32 %v440, %v436
    %v443 = vmul.f32 %v441, %v407
    %v444 = vmul.f32 %v442, %v408
    %v445 = vmul.f32 %v441, %v441
    %v446 = vmul.f32 %v442, %v442
    %v447 = vmul.f32 %v445, %v412
    %v448 = vmul.f32 %v446, %v414
    %v449 = vmax.f32 %v447, 1e-30
    %v450 = vmax.f32 %v448, 1e-30
    %v451 = vrsqrt.pop %v449
    %v452 = vmul.f32 %v451, %v449
    %v453 = vmul.f32 %v452, %v451
    %v454 = vmul.f32 0.5, %v453
    %v455 = vsub.f32 1.5, %v454
    %v456 = vmul.f32 %v451, %v455
    %vm457 = vweird.f32 %v449
    %vm458 = vweird.f32 %v451
    %vm459 = vmor %vm457, %vm458
    %v460 = vsel %vm459, %v451, %v456
    %v461 = vrsqrt.pop %v450
    %v462 = vmul.f32 %v461, %v450
    %v463 = vmul.f32 %v462, %v461
    %v464 = vmul.f32 0.5, %v463
    %v465 = vsub.f32 1.5, %v464
    %v466 = vmul.f32 %v461, %v465
    %vm467 = vweird.f32 %v450
    %vm468 = vweird.f32 %v461
    %vm469 = vmor %vm467, %vm468
    %v470 = vsel %vm469, %v461, %v466
    %v471 = vmul.f32 %v449, %v460
    %v472 = vmul.f32 %v450, %v470
    %vm473 = vcmp.gt.f32.partialorder %v471, 0.996
    %vm474 = vcmp.gt.f32.partialorder %v472, 0.996
    %v475 = vmul.f32 %v460, 0.996
    %v476 = vmul.f32 %v470, 0.996
    %v477 = vmul.f32 %v475, %v443
    %v478 = vmul.f32 %v476, %v444
    %v479 = vsel %vm473, 1, 0
    %v480 = vsel %vm474, 1, 0
    %vm481 = vcmp.eq.s32.totalorder %v479, 1
    %vm482 = vcmp.eq.s32.totalorder %v480, 1
    %v483 = vsel %vm481, %v477, %v443
    %v484 = vsel %vm482, %v478, %v444
    %485 = vst [vmem:[#allocation7] sm:$0xff] %v483
    %486 = vst [vmem:[#allocation7 + $0x8] sm:$0xff] %v484
    // Predicated region
    $region22: #{tpu_custom_call.1} parent=1 // pred_check
      _
    $region23: #{tpu_custom_call.1} parent=1 // pred_check_branch
      %488 = sbr.rel (0) target = $region25
    $region24: #{tpu_custom_call.1} parent=1 // pred_region
      %490 = vsyncadd [#allocation4], 0
      %s491 = sshll.u32 [#allocation7], 4
      %s492 = int_to_ptr.vmem [resolvable:$true] %s491
      %s493 = sshll.u32 %s3, 4
      %s494 = int_to_ptr.hbm [resolvable:$true] %s493
      %499 = dma.vmem_to_hbm [thread:$0]  %s492, 256, %s494, [#allocation4], 128, 128, 8
    $region25: #{tpu_custom_call.1} parent=1 // pred_fallthru
      _
    // Predicated region
    $region26: #{tpu_custom_call.1} parent=1 // pred_check
      _
    $region27: #{tpu_custom_call.1} parent=1 // pred_check_branch
      %501 = sbr.rel (0) target = $region29
    $region28: #{tpu_custom_call.1} parent=1 // pred_region
      %503 = dma.done [#allocation4], 256
    $region29: #{tpu_custom_call.1} parent=1 // pred_fallthru
      _
    %504 = vsyncpa [#allocation3], 1
    %505 = vsyncpa [#allocation6], 1
    %506 = vsyncpa [#allocation4], 1

</llo_original>
